<compile_context>
chip_gen: v6e
topology: v6e:2x2x1
jax: 0.10.0
libtpu: 0.0.40
codegen_flags: <defaults>
</compile_context>

<pallas_src>
import functools

import jax
import jax.numpy as jnp
import numpy as np
from jax.experimental import pallas as pl
from jax.experimental.pallas import tpu as pltpu


# ----------------------------------------------------------------------------- helpers
def _round_up(x, m):
    return ((x + m - 1) // m) * m


def _vmem_budget_bytes():
    """Per-TensorCore budget for pipelined blocks, generation aware."""
    try:
        cap = int(pltpu.get_tpu_info().vmem_capacity_bytes)
    except Exception:                      # conservative default (v7x-sized TC)
        cap = 64 * 1024 * 1024
    # leave ~40% headroom for compiler-internal scratch / semaphores,
    # and never ask for more than 64 MiB even on 128 MiB chips (v5e/v6e).
    return min((cap * 3) // 5, 64 * 1024 * 1024)


def _weight_spec(block_shape, index_map, single_buffer):
    """BlockSpec for the weight operand.

    When the weight's block index never changes across the grid it is resident,
    so double-buffering it only burns VMEM -> request a single buffer.
    """
    if single_buffer and hasattr(pl, "Buffered"):
        return pl.BlockSpec(block_shape, index_map, pipeline_mode=pl.Buffered(1))
    return pl.BlockSpec(block_shape, index_map)


def _combined_weight(weights, scales, bitW):
    """sum_b scale_b * quantize(W_b), reordered to (kh, kw, cin, cout), f32."""
    if bitW != 32:
        alpha = jnp.mean(jnp.abs(weights), axis=(1, 2, 3, 4))           # (B,)
        wq = jnp.sign(weights) * alpha[:, None, None, None, None]       # Q_W
    else:
        wq = weights
    w = jnp.tensordot(scales, wq, axes=1)                               # (Cout,Cin,K,K)
    return w.transpose(2, 3, 1, 0)                                      # (K,K,Cin,Cout)


# ----------------------------------------------------------------------------- fused path (stride == 1)
def _fused_conv_kernel(x_ref, w_ref, o_ref, *, K, OW, OHW):
    # x_ref: (1, Hp*OW, K*Cin)  kw-expanded, (h, ow)-flattened input rows (bf16/f32)
    # w_ref: (K, K*Cin, Cout_t) combined weight, kh-major
    # o_ref: (1, OHW, Cout_t)   f32
    acc = jnp.zeros(o_ref.shape[1:], jnp.float32)
    for kh in range(K):                                   # static unroll, K is tiny
        lhs = x_ref[0, pl.ds(kh * OW, OHW), :]            # shifted contiguous window
        acc = acc + jnp.dot(lhs, w_ref[kh],
                            preferred_element_type=jnp.float32)
    o_ref[0] = acc.astype(o_ref.dtype)


def _fused_forward(x_nhwc, w4, *, K, out_dtype, compute_dtype):
    """stride == 1 path: kw expanded in the wrapper, kh fused into the kernel."""
    N, Hp, Wp, Cin = x_nhwc.shape
    Cout = w4.shape[-1]
    OH, OW = Hp - K + 1, Wp - K + 1
    OHW, KCin = OH * OW, K * Cin
    lhs_rows = Hp * OW

    cbytes = jnp.dtype(compute_dtype).itemsize
    sub = 8 * (4 // cbytes)                               # sublane granularity

    # pad Cout to a multiple of 128 only when that is < 2x overhead
    Cout_t = _round_up(Cout, 128) if _round_up(Cout, 128) <= 2 * Cout else Cout

    # honest VMEM estimate ((sublane, 128)-rounded), incl. the live f32 accumulator
    est = (2 * _round_up(lhs_rows, sub) * _round_up(KCin, 128) * cbytes      # lhs, dbuf
           + K * _round_up(KCin, sub) * _round_up(Cout_t, 128) * cbytes      # weight, 1 buf
           + 3 * _round_up(OHW, 8) * _round_up(Cout_t, 128) * 4)             # out dbuf + acc
    budget = _vmem_budget_bytes()
    if est > budget:
        return None                                       # caller falls back to tiled GEMM

    # wrapper-side kw expansion (K x input bytes, already in compute dtype)
    cols = [x_nhwc[:, :, kw:kw + OW, :] for kw in range(K)]
    lhs = jnp.concatenate(cols, axis=-1).reshape(N, lhs_rows, KCin)

    w_mat = w4.reshape(K, KCin, Cout).astype(compute_dtype)
    if Cout_t != Cout:
        w_mat = jnp.pad(w_mat, ((0, 0), (0, 0), (0, Cout_t - Cout)))

    cost = pl.CostEstimate(
        flops=2 * N * OHW * Cout * K * KCin,
        transcendentals=0,
        bytes_accessed=lhs.size * cbytes + w_mat.size * cbytes + N * OHW * Cout_t * 4)

    vmem_limit = None
    if est > 12 * 1024 * 1024:
        vmem_limit = int(min(max((est * 3) // 2, 32 * 1024 * 1024), budget))

    kernel = functools.partial(_fused_conv_kernel, K=K, OW=OW, OHW=OHW)
    out = pl.pallas_call(
        kernel,
        out_shape=jax.ShapeDtypeStruct((N, OHW, Cout_t), out_dtype),
        grid_spec=pltpu.PrefetchScalarGridSpec(
            num_scalar_prefetch=0,
            grid=(N,),                                    # >=2 steps for N>=2 (megacore)
            in_specs=[
                pl.BlockSpec((1, lhs_rows, KCin), lambda n: (n, 0, 0)),
                _weight_spec((K, KCin, Cout_t), lambda n: (0, 0, 0),
                             single_buffer=True),
            ],
            out_specs=pl.BlockSpec((1, OHW, Cout_t), lambda n: (n, 0, 0)),
        ),
        compiler_params=pltpu.CompilerParams(
            dimension_semantics=("parallel",),
            vmem_limit_bytes=vmem_limit),
        cost_estimate=cost,
    )(lhs, w_mat)
    return out[:, :, :Cout].reshape(N, OH, OW, Cout)


# ----------------------------------------------------------------------------- fallback path ((m, n, k)-tiled GEMM)
def _gemm_kernel(a_ref, b_ref, o_ref, acc_ref):
    @pl.when(pl.program_id(2) == 0)
    def _init():
        acc_ref[...] = jnp.zeros_like(acc_ref)

    acc_ref[...] += jnp.dot(a_ref[...], b_ref[...],
                            preferred_element_type=jnp.float32)

    @pl.when(pl.program_id(2) == pl.num_programs(2) - 1)
    def _store():
        o_ref[...] = acc_ref[...].astype(o_ref.dtype)


def _gemm_forward(x_nhwc, w4, *, K, stride, out_dtype, compute_dtype, tm_request=512):
    """General path: compute-dtype im2col in the wrapper + (m, n, k)-tiled GEMM."""
    N, Hp, Wp, Cin = x_nhwc.shape
    Cout = w4.shape[-1]
    OH = (Hp - K) // stride + 1
    OW = (Wp - K) // stride + 1
    M, KKC = N * OH * OW, K * K * Cin

    cbytes = jnp.dtype(compute_dtype).itemsize
    sub = 8 * (4 // cbytes)

    # output channels: lane-pad only when < 2x overhead
    Cout_t = _round_up(Cout, 128) if _round_up(Cout, 128) <= 2 * Cout else Cout
    tn = Cout_t if Cout_t <= 256 else (256 if Cout_t % 256 == 0 else 128)

    # contraction dim: lane-pad only when cheap; always exactly covered by tk
    # (out-of-bounds reads on a contraction axis would corrupt real outputs).
    KKC_p = _round_up(KKC, 128) if _round_up(KKC, 128) <= 2 * KKC else KKC
    if KKC_p > 1024:
        tk = 512
        KKC_p = _round_up(KKC_p, tk)
    else:
        tk = KKC_p

    grid_n = pl.cdiv(Cout_t, tn)
    grid_k = KKC_p // tk
    w_single_buffer = (grid_n == 1 and grid_k == 1)       # resident weight block
    w_bufs = 1 if w_single_buffer else 2

    budget = _vmem_budget_bytes()

    def est(tm_):                                         # (sublane, 128)-honest bytes
        return (2 * _round_up(tm_, sub) * _round_up(tk, 128) * cbytes
                + w_bufs * _round_up(tk, sub) * _round_up(tn, 128) * cbytes
                + 2 * _round_up(tm_, 8) * _round_up(tn, 128) * 4
                + _round_up(tm_, 8) * _round_up(tn, 128) * 4)

    # cap tm so the parallel m axis keeps >= ~4 steps, then fit the VMEM budget
    tm = min(tm_request, max(128, _round_up(M, 8) // 4))
    tm = max(8, min(tm, _round_up(M, 8)))
    while tm > 128 and est(tm) > budget:
        tm //= 2
    grid_m = pl.cdiv(M, tm)                               # ragged tail is masked

    # im2col built directly in compute dtype; the KKC zero-padding is appended
    # inside the same concatenation (single materialization, no extra pad pass)
    cols = [x_nhwc[:, kh:kh + stride * OH:stride, kw:kw + stride * OW:stride, :]
            for kh in range(K) for kw in range(K)]
    if KKC_p != KKC:
        cols.append(jnp.zeros((N, OH, OW, KKC_p - KKC), compute_dtype))
    patches = jnp.concatenate(cols, axis=-1).reshape(M, KKC_p)

    w_mat = w4.reshape(KKC, Cout).astype(compute_dtype)
    if KKC_p != KKC or Cout_t != Cout:
        w_mat = jnp.pad(w_mat, ((0, KKC_p - KKC), (0, Cout_t - Cout)))

    cost = pl.CostEstimate(
        flops=2 * M * KKC * Cout,
        transcendentals=0,
        bytes_accessed=patches.size * cbytes + w_mat.size * cbytes + M * Cout_t * 4)

    vmem_limit = None
    e = est(tm)
    if e > 12 * 1024 * 1024:
        vmem_limit = int(min(max((e * 3) // 2, 32 * 1024 * 1024), budget))

    out = pl.pallas_call(
        _gemm_kernel,
        out_shape=jax.ShapeDtypeStruct((M, Cout_t), out_dtype),
        grid_spec=pltpu.PrefetchScalarGridSpec(
            num_scalar_prefetch=0,
            grid=(grid_m, grid_n, grid_k),
            in_specs=[
                pl.BlockSpec((tm, tk), lambda i, j, k: (i, k)),
                _weight_spec((tk, tn), lambda i, j, k: (k, j),
                             single_buffer=w_single_buffer),
            ],
            out_specs=pl.BlockSpec((tm, tn), lambda i, j, k: (i, j)),
            scratch_shapes=[pltpu.VMEM((tm, tn), jnp.float32)],
        ),
        compiler_params=pltpu.CompilerParams(
            dimension_semantics=("parallel", "parallel", "arbitrary"),
            vmem_limit_bytes=vmem_limit),
        cost_estimate=cost,
    )(patches, w_mat)
    return out[:, :Cout].reshape(N, OH, OW, Cout)


# ----------------------------------------------------------------------------- public forward
def new_conv_forward(x, weights, scales, *, stride, padding, bitW,
                     compute_dtype=None):
    """x: (N, Cin, H, W); weights: (num_bases, Cout, Cin, K, K); scales: (num_bases,)."""
    if compute_dtype is None:
        # keep full-precision operands for the unquantized (bitW == 32) path
        compute_dtype = jnp.float32 if bitW == 32 else jnp.bfloat16
    out_dtype = x.dtype
    K = weights.shape[-1]

    # constant-1 padding (module semantics); cast BEFORE any im2col expansion
    if padding > 0:
        x = jnp.pad(x, ((0, 0), (0, 0), (padding, padding), (padding, padding)),
                    constant_values=1.0)
    x_nhwc = x.transpose(0, 2, 3, 1).astype(compute_dtype)      # (N, Hp, Wp, Cin)

    w4 = _combined_weight(weights, scales, bitW)                # (K, K, Cin, Cout) f32

    out_nhwc = None
    if stride == 1:
        out_nhwc = _fused_forward(x_nhwc, w4, K=K,
                                  out_dtype=out_dtype, compute_dtype=compute_dtype)
    if out_nhwc is None:
        out_nhwc = _gemm_forward(x_nhwc, w4, K=K, stride=stride,
                                 out_dtype=out_dtype, compute_dtype=compute_dtype)
    return out_nhwc.transpose(0, 3, 1, 2)                       # NCHW, like the module


# ----------------------------------------------------------------------------- reference & demo
def _reference(x, weights, scales, *, stride, padding, bitW):
    """Pure-JAX reference matching the PyTorch forward (per-basis, f32 HIGHEST)."""
    if padding > 0:
        x = jnp.pad(x, ((0, 0), (0, 0), (padding, padding), (padding, padding)),
                    constant_values=1.0)
    out = None
    for b in range(weights.shape[0]):
        w = weights[b]
        if bitW != 32:
            w = jnp.sign(w) * jnp.mean(jnp.abs(w))
        y = jax.lax.conv_general_dilated(
            x, w, window_strides=(stride, stride), padding="VALID",
            dimension_numbers=("NCHW", "OIHW", "NCHW"),
            precision=jax.lax.Precision.HIGHEST)
        y = scales[b] * y
        out = y if out is None else out + y
    return out


if __name__ == "__main__":
    # small shapes consistent with the module
    N, Cin, H, W = 2, 4, 16, 16
    Cout, K = 8, 3
    num_bases, bitW = 3, 1

    key = jax.random.PRNGKey(0)
    kx, kwt, ks = jax.random.split(key, 3)
    x = jax.random.normal(kx, (N, Cin, H, W), dtype=jnp.float32)
    weights = 0.1 * jax.random.normal(kwt, (num_bases, Cout, Cin, K, K), dtype=jnp.float32)
    scales = jax.random.uniform(ks, (num_bases,), dtype=jnp.float32)   # torch.rand(1) per basis

    # stride=1, padding=1 -> fused-im2col path
    out1 = jax.block_until_ready(
        new_conv_forward(x, weights, scales, stride=1, padding=1, bitW=bitW))
    ref1 = _reference(x, weights, scales, stride=1, padding=1, bitW=bitW)
    np.testing.assert_allclose(np.asarray(out1), np.asarray(ref1), rtol=2e-2, atol=2e-2)

    # stride=2, padding=1 -> (m, n, k)-tiled GEMM fallback path
    out2 = jax.block_until_ready(
        new_conv_forward(x, weights, scales, stride=2, padding=1, bitW=bitW))
    ref2 = _reference(x, weights, scales, stride=2, padding=1, bitW=bitW)
    np.testing.assert_allclose(np.asarray(out2), np.asarray(ref2), rtol=2e-2, atol=2e-2)

    print("KERNEL_OK")
</pallas_src>

<mosaic_0001>
module attributes {stable_mosaic.version = 11 : i64} {
  func.func @_fused_conv_kernel(%arg0: i32, %arg1: memref<1x288x12xbf16, #tpu.memory_space<vmem>>, %arg2: memref<3x12x8xbf16, #tpu.memory_space<vmem>>, %arg3: memref<1x256x8xf32, #tpu.memory_space<vmem>>) attributes {dimension_semantics = [#tpu.dimension_semantics<parallel>], iteration_bounds = array<i64: 2>, scalar_prefetch = 0 : i64, scratch_operands = 0 : i64, tpu.core_type = #tpu.core_type<tc>, window_params = [{transform_indices = @transform_0, window_bounds = array<i64: 1, 288, 12>}, {pipeline_mode = #tpu.pipeline_mode<synchronous>, transform_indices = @transform_1, window_bounds = array<i64: 3, 12, 8>}, {transform_indices = @transform_2, window_bounds = array<i64: 1, 256, 8>}]} {
    %cst = arith.constant 0.000000e+00 : f32
    %0 = vector.broadcast %cst : f32 to vector<256x8xf32>
    %c0 = arith.constant 0 : index
    %c0_0 = arith.constant 0 : index
    %c0_1 = arith.constant 0 : index
    %1 = vector.load %arg1[%c0, %c0_0, %c0_1] : memref<1x288x12xbf16, #tpu.memory_space<vmem>>, vector<1x256x12xbf16>
    %2 = vector.shape_cast %1 : vector<1x256x12xbf16> to vector<256x12xbf16>
    %c0_2 = arith.constant 0 : index
    %c0_3 = arith.constant 0 : index
    %c0_4 = arith.constant 0 : index
    %3 = vector.load %arg2[%c0_2, %c0_3, %c0_4] : memref<3x12x8xbf16, #tpu.memory_space<vmem>>, vector<1x12x8xbf16>
    %4 = vector.shape_cast %3 : vector<1x12x8xbf16> to vector<12x8xbf16>
    %cst_5 = arith.constant dense<0.000000e+00> : vector<256x8xf32>
    %5 = tpu.matmul %2, %4, %cst_5 {dimension_numbers = #tpu.dot_dimension_numbers<[1], [0], [0], [1], [0, 0, 1, 1], [], []>} : vector<256x12xbf16>, vector<12x8xbf16>, vector<256x8xf32> -> vector<256x8xf32>
    %6 = arith.addf %0, %5 : vector<256x8xf32>
    %c0_6 = arith.constant 0 : index
    %c16 = arith.constant 16 : index
    %c0_7 = arith.constant 0 : index
    %7 = vector.load %arg1[%c0_6, %c16, %c0_7] : memref<1x288x12xbf16, #tpu.memory_space<vmem>>, vector<1x256x12xbf16>
    %8 = vector.shape_cast %7 : vector<1x256x12xbf16> to vector<256x12xbf16>
    %c1 = arith.constant 1 : index
    %c0_8 = arith.constant 0 : index
    %c0_9 = arith.constant 0 : index
    %9 = vector.load %arg2[%c1, %c0_8, %c0_9] : memref<3x12x8xbf16, #tpu.memory_space<vmem>>, vector<1x12x8xbf16>
    %10 = vector.shape_cast %9 : vector<1x12x8xbf16> to vector<12x8xbf16>
    %cst_10 = arith.constant dense<0.000000e+00> : vector<256x8xf32>
    %11 = tpu.matmul %8, %10, %cst_10 {dimension_numbers = #tpu.dot_dimension_numbers<[1], [0], [0], [1], [0, 0, 1, 1], [], []>} : vector<256x12xbf16>, vector<12x8xbf16>, vector<256x8xf32> -> vector<256x8xf32>
    %12 = arith.addf %6, %11 : vector<256x8xf32>
    %c0_11 = arith.constant 0 : index
    %c32 = arith.constant 32 : index
    %c0_12 = arith.constant 0 : index
    %13 = vector.load %arg1[%c0_11, %c32, %c0_12] : memref<1x288x12xbf16, #tpu.memory_space<vmem>>, vector<1x256x12xbf16>
    %14 = vector.shape_cast %13 : vector<1x256x12xbf16> to vector<256x12xbf16>
    %c2 = arith.constant 2 : index
    %c0_13 = arith.constant 0 : index
    %c0_14 = arith.constant 0 : index
    %15 = vector.load %arg2[%c2, %c0_13, %c0_14] : memref<3x12x8xbf16, #tpu.memory_space<vmem>>, vector<1x12x8xbf16>
    %16 = vector.shape_cast %15 : vector<1x12x8xbf16> to vector<12x8xbf16>
    %cst_15 = arith.constant dense<0.000000e+00> : vector<256x8xf32>
    %17 = tpu.matmul %14, %16, %cst_15 {dimension_numbers = #tpu.dot_dimension_numbers<[1], [0], [0], [1], [0, 0, 1, 1], [], []>} : vector<256x12xbf16>, vector<12x8xbf16>, vector<256x8xf32> -> vector<256x8xf32>
    %18 = arith.addf %12, %17 : vector<256x8xf32>
    %c0_16 = arith.constant 0 : index
    %c0_17 = arith.constant 0 : index
    %c0_18 = arith.constant 0 : index
    %19 = vector.load %arg3[%c0_16, %c0_17, %c0_18] : memref<1x256x8xf32, #tpu.memory_space<vmem>>, vector<1x256x8xf32>
    %20 = vector.shape_cast %19 : vector<1x256x8xf32> to vector<256x8xf32>
    %21 = vector.shape_cast %18 : vector<256x8xf32> to vector<1x256x8xf32>
    tpu.vector_store %arg3[%c0_16, %c0_17, %c0_18], %21 {strides = array<i32>} : memref<1x256x8xf32, #tpu.memory_space<vmem>>, vector<1x256x8xf32>,
    return
  }
  func.func @transform_0(%arg0: i32) -> (i32, i32, i32) {
    %c0_i32 = arith.constant 0 : i32
    %c0_i32_0 = arith.constant 0 : i32
    %c0_i32_1 = arith.constant 0 : i32
    return %arg0, %c0_i32, %c0_i32_0 : i32, i32, i32
  }
  func.func @transform_1(%arg0: i32) -> (i32, i32, i32) {
    %c0_i32 = arith.constant 0 : i32
    %c0_i32_0 = arith.constant 0 : i32
    %c0_i32_1 = arith.constant 0 : i32
    %c0_i32_2 = arith.constant 0 : i32
    return %c0_i32, %c0_i32_0, %c0_i32_1 : i32, i32, i32
  }
  func.func @transform_2(%arg0: i32) -> (i32, i32, i32) {
    %c0_i32 = arith.constant 0 : i32
    %c0_i32_0 = arith.constant 0 : i32
    %c0_i32_1 = arith.constant 0 : i32
    return %arg0, %c0_i32, %c0_i32_0 : i32, i32, i32
  }
}

</mosaic_0001>

<llo_original>
// kernel: tpu_custom_call.1
$region0: #{tpu_custom_call.1}
  #allocation0 [shape = 'u32[]', space=smem, size = 0x4, offset = 0x4, fixed_abs, tag = 'smem constant byte address 0x4 - core index']
  #allocation1 [shape = 'u32[144,128]{1,0:T(1,128)}', space=vmem, size = 0x12000, scoped, tag = 'internal scratch']
  %s0 = inlined_call_operand.vmem [shape: bf16[2,288,12], index: 0, kind: input, shape index: {}]
  %s1 = inlined_call_operand.vmem [shape: bf16[3,12,8], index: 1, kind: input, shape index: {}]
  %s2 = inlined_call_operand.vmem [shape: f32[2,256,8], index: 2, kind: output, shape index: {}]
  %s3 = sld [smem:[#allocation0]]
  $region41: #{tpu_custom_call.1} parent=0
    _
  %s5 = ssub.s32 1, %s3
  %s6 = scalar_select 0, %s5, %s3
  loop: start=0, step=1, limit=4
  $region2: #{tpu_custom_call.1} parent=0 // loop_pre_header
    _
  $region3: #{tpu_custom_call.1} parent=0 // loop_header
    %s8 = sphi 0, %s12
    %p9 = scmp.ge.s32.totalorder %s8, 4
    %s18 = sphi 0, %s20
    %s21 = sphi 0, %s18
    %s22 = sphi 0, %s21
    %s38 = sphi 0, %s22
    %s42 = sphi 0, %s42
    %s44 = sphi 0, %s42
    %s45 = sphi 0, %s44
    %s59 = sphi 0, %s45
    %s65 = sphi 0, %s67
    %s68 = sphi 0, %s65
    %s69 = sphi 0, %s68
    %s85 = sphi 0, %s69
  $region4: #{tpu_custom_call.1} parent=0 // loop_header_branch
    %11 = sbr.rel (%p9) target = $region8
  $region5: #{tpu_custom_call.1} parent=0 // loop_body
    %s13 = ssub.s32 %s8, 1
    %s14 = ssub.s32 %s8, 2
    %s15 = sadd.s32 %s8, 1
    %s16 = ssub.s32 %s8, %s15
    %p17 = scmp.eq.s32.totalorder %s16, 0
    %s19 = sadd.s32 %s18, 1
    %s20 = scalar_select %p17, %s18, %s19
    %p23 = pneg %p17
    %p24 = scmp.eq.s32.totalorder %s8, 1
    %p25 = por %p23, %p24
    %p26 = scmp.ne.s32.totalorder %s18, %s21
    %p27 = scmp.eq.s32.totalorder %s8, 0
    %p28 = por %p26, %p27
    %p29 = scmp.ne.s32.totalorder %s18, %s21
    %p30 = scmp.eq.s32.totalorder %s13, 1
    %p31 = por %p29, %p30
    %p32 = scmp.ne.s32.totalorder %s21, %s22
    %p33 = scmp.eq.s32.totalorder %s13, 0
    %p34 = por %p32, %p33
    %p35 = scmp.ne.s32.totalorder %s21, %s22
    %p36 = scmp.eq.s32.totalorder %s14, 1
    %p37 = por %p35, %p36
    %p39 = scmp.ne.s32.totalorder %s22, %s38
    %p40 = scmp.eq.s32.totalorder %s14, 0
    %p41 = por %p39, %p40
    %s43 = sadd.s32 %s42, 1
    %p46 = scmp.eq.s32.totalorder %s8, 1
    %p47 = scmp.ne.s32.totalorder %s42, %s44
    %p48 = scmp.eq.s32.totalorder %s8, 0
    %p49 = por %p47, %p48
    %p50 = scmp.ne.s32.totalorder %s42, %s44
    %p51 = scmp.eq.s32.totalorder %s13, 1
    %p52 = por %p50, %p51
    %p53 = scmp.ne.s32.totalorder %s44, %s45
    %p54 = scmp.eq.s32.totalorder %s13, 0
    %p55 = por %p53, %p54
    %p56 = scmp.ne.s32.totalorder %s44, %s45
    %p57 = scmp.eq.s32.totalorder %s14, 1
    %p58 = por %p56, %p57
    %p60 = scmp.ne.s32.totalorder %s45, %s59
    %p61 = scmp.eq.s32.totalorder %s14, 0
    %p62 = por %p60, %p61
    %s63 = ssub.s32 %s8, %s15
    %p64 = scmp.eq.s32.totalorder %s63, 0
    %s66 = sadd.s32 %s65, 1
    %s67 = scalar_select %p64, %s65, %s66
    %p70 = pneg %p64
    %p71 = scmp.eq.s32.totalorder %s8, 1
    %p72 = por %p70, %p71
    %p73 = scmp.ne.s32.totalorder %s65, %s68
    %p74 = scmp.eq.s32.totalorder %s8, 0
    %p75 = por %p73, %p74
    %p76 = scmp.ne.s32.totalorder %s65, %s68
    %p77 = scmp.eq.s32.totalorder %s13, 1
    %p78 = por %p76, %p77
    %p79 = scmp.ne.s32.totalorder %s68, %s69
    %p80 = scmp.eq.s32.totalorder %s13, 0
    %p81 = por %p79, %p80
    %p82 = scmp.ne.s32.totalorder %s68, %s69
    %p83 = scmp.eq.s32.totalorder %s14, 1
    %p84 = por %p82, %p83
    %p86 = scmp.ne.s32.totalorder %s69, %s85
    %p87 = scmp.eq.s32.totalorder %s14, 0
    %p88 = por %p86, %p87
    %p89 = scmp.le.s32.totalorder 1, %s8
    %p90 = scmp.lt.s32.totalorder %s8, 3
    %p91 = pnand %p89, %p90
    %p92 = pneg %p91
    // Predicated region
    $region9: #{tpu_custom_call.1} parent=5 // pred_check
      _
    $region10: #{tpu_custom_call.1} parent=5 // pred_check_branch
      %94 = sbr.rel (%p91) target = $region12
    $region11: #{tpu_custom_call.1} parent=5 // pred_region
      %s95 = ssub.s32 %s8, 1
      // Predicated region
      $region13: #{tpu_custom_call.1} parent=11 // pred_check
        %p96 = pneg %p55
      $region14: #{tpu_custom_call.1} parent=11 // pred_check_branch
        %98 = sbr.rel (%p96) target = $region16
      $region15: #{tpu_custom_call.1} parent=11 // pred_region
        _
      $region16: #{tpu_custom_call.1} parent=11 // pred_fallthru
        _
    $region12: #{tpu_custom_call.1} parent=5 // pred_fallthru
      _
    %p99 = scmp.lt.s32.totalorder %s8, 2
    // Predicated region
    $region17: #{tpu_custom_call.1} parent=5 // pred_check
      %p100 = pneg %p99
    $region18: #{tpu_custom_call.1} parent=5 // pred_check_branch
      %102 = sbr.rel (%p100) target = $region20
    $region19: #{tpu_custom_call.1} parent=5 // pred_region
      // Predicated region
      $region21: #{tpu_custom_call.1} parent=19 // pred_check
        %p103 = pneg %p28
      $region22: #{tpu_custom_call.1} parent=19 // pred_check_branch
        %105 = sbr.rel (%p103) target = $region24
      $region23: #{tpu_custom_call.1} parent=19 // pred_region
        %p106 = scmp.lt.s32.totalorder %s8, 1
        %s107 = scalar_select %p106, %s8, 1
        %s108 = smul.addr %s107, 36
        %s109 = smul.addr %s108, 4
        %s110 = scalar_lea.vmem %s0, %s109
      $region24: #{tpu_custom_call.1} parent=19 // pred_fallthru
        _
    $region20: #{tpu_custom_call.1} parent=5 // pred_fallthru
      _
    %p111 = scmp.le.s32.totalorder 1, %s8
    %p112 = scmp.lt.s32.totalorder %s8, 3
    %p113 = pnand %p111, %p112
    %p114 = pneg %p113
    // Predicated region
    $region25: #{tpu_custom_call.1} parent=5 // pred_check
      _
    $region26: #{tpu_custom_call.1} parent=5 // pred_check_branch
      %116 = sbr.rel (%p113) target = $region28
    $region27: #{tpu_custom_call.1} parent=5 // pred_region
      %s117 = ssub.s32 %s8, 1
      %p118 = scmp.lt.s32.totalorder %s13, 1
      %s119 = scalar_select %p118, %s13, 1
      %s120 = smul.addr %s119, 36
      %s121 = smul.addr %s120, 4
      %s122 = scalar_lea.vmem %s0, %s121
      %p123 = pneg %p34
      %p124 = pneg %p31
      %p125 = pneg %p55
      %p126 = pneg %p52
      %p127 = pneg %p81
      %p128 = pneg %p78
      %p129 = scmp.lt.s32.totalorder %s13, 1
      %s130 = scalar_select %p129, %s13, 1
      %s131 = smul.addr %s130, 32
      %s132 = smul.addr %s131, 8
      %s133 = scalar_lea.vmem %s2, %s132
      %p134 = scmp.lt.s32.totalorder %s13, 1
      %s135 = scalar_select %p134, %s13, 1
      %s136 = smul.addr %s135, 36
      %s137 = smul.addr %s136, 4
      %s138 = scalar_lea.vmem %s0, %s137
      %p139 = scmp.lt.s32.totalorder %s13, 1
      %s140 = scalar_select %p139, %s13, 1
      %s141 = smul.addr %s140, 32
      %s142 = smul.addr %s141, 8
      %s143 = scalar_lea.vmem %s2, %s142
      %v145 = vld [vmem:[%s138] sm:$0xf]
      %v146 = vld [vmem:[%s138 + $0x4] sm:$0xf]
      %v147 = vld [vmem:[%s138 + $0x8] sm:$0xf]
      %v148 = vld [vmem:[%s138 + $0xc] sm:$0xf]
      %v149 = vld [vmem:[%s138 + $0x10] sm:$0xf]
      %v150 = vld [vmem:[%s138 + $0x14] sm:$0xf]
      %v151 = vld [vmem:[%s138 + $0x18] sm:$0xf]
      %v152 = vld [vmem:[%s138 + $0x1c] sm:$0xf]
      %v153 = vld [vmem:[%s138 + $0x20] sm:$0xf]
      %v154 = vld [vmem:[%s138 + $0x24] sm:$0xf]
      %v155 = vld [vmem:[%s138 + $0x28] sm:$0xf]
      %v156 = vld [vmem:[%s138 + $0x2c] sm:$0xf]
      %v157 = vld [vmem:[%s138 + $0x30] sm:$0xf]
      %v158 = vld [vmem:[%s138 + $0x34] sm:$0xf]
      %v159 = vld [vmem:[%s138 + $0x38] sm:$0xf]
      %v160 = vld [vmem:[%s138 + $0x3c] sm:$0xf]
      %v161 = vld [vmem:[%s138 + $0x40] sm:$0xf]
      %v162 = vld [vmem:[%s138 + $0x44] sm:$0xf]
      %v163 = vld [vmem:[%s138 + $0x48] sm:$0xf]
      %v164 = vld [vmem:[%s138 + $0x4c] sm:$0xf]
      %v165 = vld [vmem:[%s138 + $0x50] sm:$0xf]
      %v166 = vld [vmem:[%s138 + $0x54] sm:$0xf]
      %v167 = vld [vmem:[%s138 + $0x58] sm:$0xf]
      %v168 = vld [vmem:[%s138 + $0x5c] sm:$0xf]
      %v169 = vld [vmem:[%s138 + $0x60] sm:$0xf]
      %v170 = vld [vmem:[%s138 + $0x64] sm:$0xf]
      %v171 = vld [vmem:[%s138 + $0x68] sm:$0xf]
      %v172 = vld [vmem:[%s138 + $0x6c] sm:$0xf]
      %v173 = vld [vmem:[%s138 + $0x70] sm:$0xf]
      %v174 = vld [vmem:[%s138 + $0x74] sm:$0xf]
      %v175 = vld [vmem:[%s138 + $0x78] sm:$0xf]
      %v176 = vld [vmem:[%s138 + $0x7c] sm:$0xf]
      %v177 = vld [vmem:[%s1] sm:$0xf]
      %v178 = vld [vmem:[%s1 + $0x4] sm:$0x3]
      %v179 = vld [vmem:[%s138 + $0x80] sm:$0xf]
      %v180 = vld [vmem:[%s138 + $0x84] sm:$0xf]
      %s181 = scalar_lea.vmem %s1, 8
      %v182 = vld [vmem:[%s181] sm:$0xf]
      %v183 = vld [vmem:[%s181 + $0x4] sm:$0x3]
      %v216 = vunpack.c.l.b16 %v147
      %v217 = vunpack.c.l.b16 %v148
      %v218 = vunpack.c.l.b16 %v149
      %v219 = vunpack.c.l.b16 %v150
      %v220 = vunpack.c.l.b16 %v151
      %v221 = vunpack.c.l.b16 %v152
      %v222 = vunpack.c.l.b16 %v153
      %v223 = vunpack.c.l.b16 %v154
      %v224 = vunpack.c.l.b16 %v155
      %v225 = vunpack.c.l.b16 %v156
      %v226 = vunpack.c.l.b16 %v157
      %v227 = vunpack.c.l.b16 %v158
      %v228 = vunpack.c.l.b16 %v159
      %v229 = vunpack.c.l.b16 %v160
      %v230 = vunpack.c.l.b16 %v161
      %v231 = vunpack.c.l.b16 %v162
      %v232 = vunpack.c.l.b16 %v163
      %v233 = vunpack.c.l.b16 %v164
      %v234 = vunpack.c.l.b16 %v165
      %v235 = vunpack.c.l.b16 %v166
      %v236 = vunpack.c.l.b16 %v167
      %v237 = vunpack.c.l.b16 %v168
      %v238 = vunpack.c.l.b16 %v169
      %v239 = vunpack.c.l.b16 %v170
      %v240 = vunpack.c.l.b16 %v171
      %v241 = vunpack.c.l.b16 %v172
      %v242 = vunpack.c.l.b16 %v173
      %v243 = vunpack.c.l.b16 %v174
      %v244 = vunpack.c.l.b16 %v175
      %v245 = vunpack.c.l.b16 %v176
      %v246 = vunpack.c.l.b16 %v179
      %v247 = vunpack.c.l.b16 %v180
      %v248 = vpack.c.b16 %v217, %v216
      %v249 = vpack.c.b16 %v219, %v218
      %v250 = vpack.c.b16 %v221, %v220
      %v251 = vpack.c.b16 %v223, %v222
      %v252 = vpack.c.b16 %v225, %v224
      %v253 = vpack.c.b16 %v227, %v226
      %v254 = vpack.c.b16 %v229, %v228
      %v255 = vpack.c.b16 %v231, %v230
      %v256 = vpack.c.b16 %v233, %v232
      %v257 = vpack.c.b16 %v235, %v234
      %v258 = vpack.c.b16 %v237, %v236
      %v259 = vpack.c.b16 %v239, %v238
      %v260 = vpack.c.b16 %v241, %v240
      %v261 = vpack.c.b16 %v243, %v242
      %v262 = vpack.c.b16 %v245, %v244
      %v263 = vpack.c.b16 %v247, %v246
      %v266 = vunpack.c.l.b16 %v182
      %v267 = vunpack.c.l.b16 %v183
      %v268 = vpack.c.b16 %v267, %v266
      %vm269 = vcmask 97280
      %v271 = vsel %vm269, %v248, 0
      %v274 = vsel %vm269, %v249, 0
      %v277 = vsel %vm269, %v250, 0
      %v280 = vsel %vm269, %v251, 0
      %v283 = vsel %vm269, %v252, 0
      %v286 = vsel %vm269, %v253, 0
      %v289 = vsel %vm269, %v254, 0
      %v292 = vsel %vm269, %v255, 0
      %v295 = vsel %vm269, %v256, 0
      %v298 = vsel %vm269, %v257, 0
      %v301 = vsel %vm269, %v258, 0
      %v304 = vsel %vm269, %v259, 0
      %v307 = vsel %vm269, %v260, 0
      %v310 = vsel %vm269, %v261, 0
      %v313 = vsel %vm269, %v262, 0
      %v316 = vsel %vm269, %v263, 0
      %vm318 = vcmask 1045504
      %v320 = vsel %vm318, %v268, 0
      %322 = vmatprep.subr.bf16.mxu0 0
      %323 = vmatpush1.bf16.msra.mxu0 0
      %324 = vmatprep.subr.bf16.mxu0 0
      %325 = vmatpush1.bf16.msra.mxu0 0
      %326 = vmatprep.subr.bf16.mxu0 0
      %327 = vmatpush1.bf16.msra.mxu0 0
      %328 = vmatprep.subr.bf16.mxu0 0
      %329 = vmatpush1.bf16.msra.mxu0 0
      %330 = vmatprep.subr.bf16.mxu0 0
      %331 = vmatpush1.bf16.msra.mxu0 0
      %332 = vmatprep.subr.bf16.mxu0 0
      %333 = vmatpush1.bf16.msra.mxu0 0
      %334 = vmatprep.subr.bf16.mxu0 0
      %335 = vmatpush1.bf16.msra.mxu0 0
      %336 = vmatprep.subr.bf16.mxu0 0
      %337 = vmatpush1.bf16.msra.mxu0 %v320
      %338 = vmatprep.subr.bf16.mxu0 0
      %339 = vmatpush2.bf16.msra.mxu0 0
      %340 = vmatprep.subr.bf16.mxu0 0
      %341 = vmatpush2.bf16.msra.mxu0 0
      %342 = vmatprep.subr.bf16.mxu0 0
      %343 = vmatpush2.bf16.msra.mxu0 0
      %344 = vmatprep.subr.bf16.mxu0 0
      %345 = vmatpush2.bf16.msra.mxu0 0
      %346 = vmatprep.subr.bf16.mxu0 0
      %347 = vmatpush2.bf16.msra.mxu0 0
      %348 = vmatprep.subr.bf16.mxu0 0
      %349 = vmatpush2.bf16.msra.mxu0 0
      %350 = vmatprep.subr.bf16.mxu0 0
      %351 = vmatpush2.bf16.msra.mxu0 0
      %352 = vmatprep.subr.bf16.mxu0 0
      %353 = vmatpush2.bf16.msra.mxu0 0
      %354 = vmatprep.mubr.bf16.mxu0 0
      %355 = vmatmul.mubr.bf16.gmra.mxu0 %v271
      %v356 = vpop.f32.mrf.mxu0
      %v357 = vadd.f32 0.0, %v356
      %v358 = vpop.f32.mrf.mxu0
      %v359 = vpop.f32.mrf.mxu0
      %v360 = vadd.f32 0.0, %v359
      %v361 = vpop.f32.mrf.mxu0
      %362 = vmatprep.mubr.bf16.mxu0 0
      %363 = vmatmul.mubr.bf16.gmra.mxu0 %v274
      %v364 = vpop.f32.mrf.mxu0
      %v365 = vadd.f32 0.0, %v364
      %v366 = vpop.f32.mrf.mxu0
      %v367 = vpop.f32.mrf.mxu0
      %v368 = vadd.f32 0.0, %v367
      %v369 = vpop.f32.mrf.mxu0
      %370 = vmatprep.mubr.bf16.mxu0 0
      %371 = vmatmul.mubr.bf16.gmra.mxu0 %v277
      %v372 = vpop.f32.mrf.mxu0
      %v373 = vadd.f32 0.0, %v372
      %v374 = vpop.f32.mrf.mxu0
      %v375 = vpop.f32.mrf.mxu0
      %v376 = vadd.f32 0.0, %v375
      %v377 = vpop.f32.mrf.mxu0
      %378 = vmatprep.mubr.bf16.mxu0 0
      %379 = vmatmul.mubr.bf16.gmra.mxu0 %v280
      %v380 = vpop.f32.mrf.mxu0
      %v381 = vadd.f32 0.0, %v380
      %v382 = vpop.f32.mrf.mxu0
      %v383 = vpop.f32.mrf.mxu0
      %v384 = vadd.f32 0.0, %v383
      %v385 = vpop.f32.mrf.mxu0
      %386 = vmatprep.mubr.bf16.mxu0 0
      %387 = vmatmul.mubr.bf16.gmra.mxu0 %v283
      %v388 = vpop.f32.mrf.mxu0
      %v389 = vadd.f32 0.0, %v388
      %v390 = vpop.f32.mrf.mxu0
      %v391 = vpop.f32.mrf.mxu0
      %v392 = vadd.f32 0.0, %v391
      %v393 = vpop.f32.mrf.mxu0
      %394 = vmatprep.mubr.bf16.mxu0 0
      %395 = vmatmul.mubr.bf16.gmra.mxu0 %v286
      %v396 = vpop.f32.mrf.mxu0
      %v397 = vadd.f32 0.0, %v396
      %v398 = vpop.f32.mrf.mxu0
      %v399 = vpop.f32.mrf.mxu0
      %v400 = vadd.f32 0.0, %v399
      %v401 = vpop.f32.mrf.mxu0
      %402 = vmatprep.mubr.bf16.mxu0 0
      %403 = vmatmul.mubr.bf16.gmra.mxu0 %v289
      %v404 = vpop.f32.mrf.mxu0
      %v405 = vadd.f32 0.0, %v404
      %v406 = vpop.f32.mrf.mxu0
      %v407 = vpop.f32.mrf.mxu0
      %v408 = vadd.f32 0.0, %v407
      %v409 = vpop.f32.mrf.mxu0
      %410 = vmatprep.mubr.bf16.mxu0 0
      %411 = vmatmul.mubr.bf16.gmra.mxu0 %v292
      %v412 = vpop.f32.mrf.mxu0
      %v413 = vadd.f32 0.0, %v412
      %v414 = vpop.f32.mrf.mxu0
      %v415 = vpop.f32.mrf.mxu0
      %v416 = vadd.f32 0.0, %v415
      %v417 = vpop.f32.mrf.mxu0
      %418 = vmatprep.mubr.bf16.mxu0 0
      %419 = vmatmul.mubr.bf16.gmra.mxu0 %v295
      %v420 = vpop.f32.mrf.mxu0
      %v421 = vadd.f32 0.0, %v420
      %v422 = vpop.f32.mrf.mxu0
      %v423 = vpop.f32.mrf.mxu0
      %v424 = vadd.f32 0.0, %v423
      %v425 = vpop.f32.mrf.mxu0
      %426 = vmatprep.mubr.bf16.mxu0 0
      %427 = vmatmul.mubr.bf16.gmra.mxu0 %v298
      %v428 = vpop.f32.mrf.mxu0
      %v429 = vadd.f32 0.0, %v428
      %v430 = vpop.f32.mrf.mxu0
      %v431 = vpop.f32.mrf.mxu0
      %v432 = vadd.f32 0.0, %v431
      %v433 = vpop.f32.mrf.mxu0
      %434 = vmatprep.mubr.bf16.mxu0 0
      %435 = vmatmul.mubr.bf16.gmra.mxu0 %v301
      %v436 = vpop.f32.mrf.mxu0
      %v437 = vadd.f32 0.0, %v436
      %v438 = vpop.f32.mrf.mxu0
      %v439 = vpop.f32.mrf.mxu0
      %v440 = vadd.f32 0.0, %v439
      %v441 = vpop.f32.mrf.mxu0
      %442 = vmatprep.mubr.bf16.mxu0 0
      %443 = vmatmul.mubr.bf16.gmra.mxu0 %v304
      %v444 = vpop.f32.mrf.mxu0
      %v445 = vadd.f32 0.0, %v444
      %v446 = vpop.f32.mrf.mxu0
      %v447 = vpop.f32.mrf.mxu0
      %v448 = vadd.f32 0.0, %v447
      %v449 = vpop.f32.mrf.mxu0
      %450 = vmatprep.mubr.bf16.mxu0 0
      %451 = vmatmul.mubr.bf16.gmra.mxu0 %v307
      %v452 = vpop.f32.mrf.mxu0
      %v453 = vadd.f32 0.0, %v452
      %v454 = vpop.f32.mrf.mxu0
      %v455 = vpop.f32.mrf.mxu0
      %v456 = vadd.f32 0.0, %v455
      %v457 = vpop.f32.mrf.mxu0
      %458 = vmatprep.mubr.bf16.mxu0 0
      %459 = vmatmul.mubr.bf16.gmra.mxu0 %v310
      %v460 = vpop.f32.mrf.mxu0
      %v461 = vadd.f32 0.0, %v460
      %v462 = vpop.f32.mrf.mxu0
      %v463 = vpop.f32.mrf.mxu0
      %v464 = vadd.f32 0.0, %v463
      %v465 = vpop.f32.mrf.mxu0
      %466 = vmatprep.mubr.bf16.mxu0 0
      %467 = vmatmul.mubr.bf16.gmra.mxu0 %v313
      %v468 = vpop.f32.mrf.mxu0
      %v469 = vadd.f32 0.0, %v468
      %v470 = vpop.f32.mrf.mxu0
      %v471 = vpop.f32.mrf.mxu0
      %v472 = vadd.f32 0.0, %v471
      %v473 = vpop.f32.mrf.mxu0
      %474 = vmatprep.mubr.bf16.mxu0 0
      %475 = vmatmul.mubr.bf16.gmra.mxu0 %v316
      %v476 = vpop.f32.mrf.mxu0
      %v477 = vadd.f32 0.0, %v476
      %v478 = vpop.f32.mrf.mxu0
      %v479 = vpop.f32.mrf.mxu0
      %v480 = vadd.f32 0.0, %v479
      %v481 = vpop.f32.mrf.mxu0
      %482 = vdwg.mxu0
      %v485 = vunpack.c.l.b16 %v145
      %v486 = vunpack.c.l.b16 %v146
      %v487 = vpack.c.b16 %v486, %v485
      %v490 = vunpack.c.l.b16 %v177
      %v491 = vunpack.c.l.b16 %v178
      %v492 = vpack.c.b16 %v491, %v490
      %v494 = vsel %vm269, %v487, 0
      %v497 = vsel %vm318, %v492, 0
      %499 = vmatprep.subr.bf16.mxu0 0
      %500 = vmatpush1.bf16.msra.mxu0 0
      %501 = vmatprep.subr.bf16.mxu0 0
      %502 = vmatpush1.bf16.msra.mxu0 0
      %503 = vmatprep.subr.bf16.mxu0 0
      %504 = vmatpush1.bf16.msra.mxu0 0
      %505 = vmatprep.subr.bf16.mxu0 0
      %506 = vmatpush1.bf16.msra.mxu0 0
      %507 = vmatprep.subr.bf16.mxu0 0
      %508 = vmatpush1.bf16.msra.mxu0 0
      %509 = vmatprep.subr.bf16.mxu0 0
      %510 = vmatpush1.bf16.msra.mxu0 0
      %511 = vmatprep.subr.bf16.mxu0 0
      %512 = vmatpush1.bf16.msra.mxu0 0
      %513 = vmatprep.subr.bf16.mxu0 0
      %514 = vmatpush1.bf16.msra.mxu0 %v497
      %515 = vmatprep.subr.bf16.mxu0 0
      %516 = vmatpush2.bf16.msra.mxu0 0
      %517 = vmatprep.subr.bf16.mxu0 0
      %518 = vmatpush2.bf16.msra.mxu0 0
      %519 = vmatprep.subr.bf16.mxu0 0
      %520 = vmatpush2.bf16.msra.mxu0 0
      %521 = vmatprep.subr.bf16.mxu0 0
      %522 = vmatpush2.bf16.msra.mxu0 0
      %523 = vmatprep.subr.bf16.mxu0 0
      %524 = vmatpush2.bf16.msra.mxu0 0
      %525 = vmatprep.subr.bf16.mxu0 0
      %526 = vmatpush2.bf16.msra.mxu0 0
      %527 = vmatprep.subr.bf16.mxu0 0
      %528 = vmatpush2.bf16.msra.mxu0 0
      %529 = vmatprep.subr.bf16.mxu0 0
      %530 = vmatpush2.bf16.msra.mxu0 0
      %531 = vmatprep.mubr.bf16.mxu0 0
      %532 = vmatmul.mubr.bf16.gmra.mxu0 %v494
      %v533 = vpop.f32.mrf.mxu0
      %v534 = vadd.f32 %v357, %v533
      %v535 = vpop.f32.mrf.mxu0
      %v536 = vpop.f32.mrf.mxu0
      %v537 = vadd.f32 %v360, %v536
      %v538 = vpop.f32.mrf.mxu0
      %539 = vmatprep.mubr.bf16.mxu0 0
      %540 = vmatmul.mubr.bf16.gmra.mxu0 %v271
      %v541 = vpop.f32.mrf.mxu0
      %v542 = vadd.f32 %v365, %v541
      %v543 = vpop.f32.mrf.mxu0
      %v544 = vpop.f32.mrf.mxu0
      %v545 = vadd.f32 %v368, %v544
      %v546 = vpop.f32.mrf.mxu0
      %547 = vmatprep.mubr.bf16.mxu0 0
      %548 = vmatmul.mubr.bf16.gmra.mxu0 %v274
      %v549 = vpop.f32.mrf.mxu0
      %v550 = vadd.f32 %v373, %v549
      %v551 = vpop.f32.mrf.mxu0
      %v552 = vpop.f32.mrf.mxu0
      %v553 = vadd.f32 %v376, %v552
      %v554 = vpop.f32.mrf.mxu0
      %555 = vmatprep.mubr.bf16.mxu0 0
      %556 = vmatmul.mubr.bf16.gmra.mxu0 %v277
      %v557 = vpop.f32.mrf.mxu0
      %v558 = vadd.f32 %v381, %v557
      %v559 = vpop.f32.mrf.mxu0
      %v560 = vpop.f32.mrf.mxu0
      %v561 = vadd.f32 %v384, %v560
      %v562 = vpop.f32.mrf.mxu0
      %563 = vmatprep.mubr.bf16.mxu0 0
      %564 = vmatmul.mubr.bf16.gmra.mxu0 %v280
      %v565 = vpop.f32.mrf.mxu0
      %v566 = vadd.f32 %v389, %v565
      %v567 = vpop.f32.mrf.mxu0
      %v568 = vpop.f32.mrf.mxu0
      %v569 = vadd.f32 %v392, %v568
      %v570 = vpop.f32.mrf.mxu0
      %571 = vmatprep.mubr.bf16.mxu0 0
      %572 = vmatmul.mubr.bf16.gmra.mxu0 %v283
      %v573 = vpop.f32.mrf.mxu0
      %v574 = vadd.f32 %v397, %v573
      %v575 = vpop.f32.mrf.mxu0
      %v576 = vpop.f32.mrf.mxu0
      %v577 = vadd.f32 %v400, %v576
      %v578 = vpop.f32.mrf.mxu0
      %579 = vmatprep.mubr.bf16.mxu0 0
      %580 = vmatmul.mubr.bf16.gmra.mxu0 %v286
      %v581 = vpop.f32.mrf.mxu0
      %v582 = vadd.f32 %v405, %v581
      %v583 = vpop.f32.mrf.mxu0
      %v584 = vpop.f32.mrf.mxu0
      %v585 = vadd.f32 %v408, %v584
      %v586 = vpop.f32.mrf.mxu0
      %587 = vmatprep.mubr.bf16.mxu0 0
      %588 = vmatmul.mubr.bf16.gmra.mxu0 %v289
      %v589 = vpop.f32.mrf.mxu0
      %v590 = vadd.f32 %v413, %v589
      %v591 = vpop.f32.mrf.mxu0
      %v592 = vpop.f32.mrf.mxu0
      %v593 = vadd.f32 %v416, %v592
      %v594 = vpop.f32.mrf.mxu0
      %595 = vmatprep.mubr.bf16.mxu0 0
      %596 = vmatmul.mubr.bf16.gmra.mxu0 %v292
      %v597 = vpop.f32.mrf.mxu0
      %v598 = vadd.f32 %v421, %v597
      %v599 = vpop.f32.mrf.mxu0
      %v600 = vpop.f32.mrf.mxu0
      %v601 = vadd.f32 %v424, %v600
      %v602 = vpop.f32.mrf.mxu0
      %603 = vmatprep.mubr.bf16.mxu0 0
      %604 = vmatmul.mubr.bf16.gmra.mxu0 %v295
      %v605 = vpop.f32.mrf.mxu0
      %v606 = vadd.f32 %v429, %v605
      %v607 = vpop.f32.mrf.mxu0
      %v608 = vpop.f32.mrf.mxu0
      %v609 = vadd.f32 %v432, %v608
      %v610 = vpop.f32.mrf.mxu0
      %611 = vmatprep.mubr.bf16.mxu0 0
      %612 = vmatmul.mubr.bf16.gmra.mxu0 %v298
      %v613 = vpop.f32.mrf.mxu0
      %v614 = vadd.f32 %v437, %v613
      %v615 = vpop.f32.mrf.mxu0
      %v616 = vpop.f32.mrf.mxu0
      %v617 = vadd.f32 %v440, %v616
      %v618 = vpop.f32.mrf.mxu0
      %619 = vmatprep.mubr.bf16.mxu0 0
      %620 = vmatmul.mubr.bf16.gmra.mxu0 %v301
      %v621 = vpop.f32.mrf.mxu0
      %v622 = vadd.f32 %v445, %v621
      %v623 = vpop.f32.mrf.mxu0
      %v624 = vpop.f32.mrf.mxu0
      %v625 = vadd.f32 %v448, %v624
      %v626 = vpop.f32.mrf.mxu0
      %627 = vmatprep.mubr.bf16.mxu0 0
      %628 = vmatmul.mubr.bf16.gmra.mxu0 %v304
      %v629 = vpop.f32.mrf.mxu0
      %v630 = vadd.f32 %v453, %v629
      %v631 = vpop.f32.mrf.mxu0
      %v632 = vpop.f32.mrf.mxu0
      %v633 = vadd.f32 %v456, %v632
      %v634 = vpop.f32.mrf.mxu0
      %635 = vmatprep.mubr.bf16.mxu0 0
      %636 = vmatmul.mubr.bf16.gmra.mxu0 %v307
      %v637 = vpop.f32.mrf.mxu0
      %v638 = vadd.f32 %v461, %v637
      %v639 = vpop.f32.mrf.mxu0
      %v640 = vpop.f32.mrf.mxu0
      %v641 = vadd.f32 %v464, %v640
      %v642 = vpop.f32.mrf.mxu0
      %643 = vmatprep.mubr.bf16.mxu0 0
      %644 = vmatmul.mubr.bf16.gmra.mxu0 %v310
      %v645 = vpop.f32.mrf.mxu0
      %v646 = vadd.f32 %v469, %v645
      %v647 = vpop.f32.mrf.mxu0
      %v648 = vpop.f32.mrf.mxu0
      %v649 = vadd.f32 %v472, %v648
      %v650 = vpop.f32.mrf.mxu0
      %651 = vmatprep.mubr.bf16.mxu0 0
      %652 = vmatmul.mubr.bf16.gmra.mxu0 %v313
      %v653 = vpop.f32.mrf.mxu0
      %v654 = vadd.f32 %v477, %v653
      %v655 = vpop.f32.mrf.mxu0
      %v656 = vpop.f32.mrf.mxu0
      %v657 = vadd.f32 %v480, %v656
      %v658 = vpop.f32.mrf.mxu0
      %659 = vdwg.mxu0
      %v660 = vld [vmem:[%s138 + $0x10] sm:$0xf]
      %v661 = vld [vmem:[%s138 + $0x14] sm:$0xf]
      %v662 = vld [vmem:[%s138 + $0x18] sm:$0xf]
      %v663 = vld [vmem:[%s138 + $0x1c] sm:$0xf]
      %v664 = vld [vmem:[%s138 + $0x20] sm:$0xf]
      %v665 = vld [vmem:[%s138 + $0x24] sm:$0xf]
      %v666 = vld [vmem:[%s138 + $0x28] sm:$0xf]
      %v667 = vld [vmem:[%s138 + $0x2c] sm:$0xf]
      %v668 = vld [vmem:[%s138 + $0x30] sm:$0xf]
      %v669 = vld [vmem:[%s138 + $0x34] sm:$0xf]
      %v670 = vld [vmem:[%s138 + $0x38] sm:$0xf]
      %v671 = vld [vmem:[%s138 + $0x3c] sm:$0xf]
      %v672 = vld [vmem:[%s138 + $0x40] sm:$0xf]
      %v673 = vld [vmem:[%s138 + $0x44] sm:$0xf]
      %v674 = vld [vmem:[%s138 + $0x48] sm:$0xf]
      %v675 = vld [vmem:[%s138 + $0x4c] sm:$0xf]
      %v676 = vld [vmem:[%s138 + $0x50] sm:$0xf]
      %v677 = vld [vmem:[%s138 + $0x54] sm:$0xf]
      %v678 = vld [vmem:[%s138 + $0x58] sm:$0xf]
      %v679 = vld [vmem:[%s138 + $0x5c] sm:$0xf]
      %v680 = vld [vmem:[%s138 + $0x60] sm:$0xf]
      %v681 = vld [vmem:[%s138 + $0x64] sm:$0xf]
      %v682 = vld [vmem:[%s138 + $0x68] sm:$0xf]
      %v683 = vld [vmem:[%s138 + $0x6c] sm:$0xf]
      %v684 = vld [vmem:[%s138 + $0x70] sm:$0xf]
      %v685 = vld [vmem:[%s138 + $0x74] sm:$0xf]
      %v686 = vld [vmem:[%s138 + $0x78] sm:$0xf]
      %v687 = vld [vmem:[%s138 + $0x7c] sm:$0xf]
      %v688 = vld [vmem:[%s138 + $0x80] sm:$0xf]
      %v689 = vld [vmem:[%s138 + $0x84] sm:$0xf]
      %v690 = vld [vmem:[%s138 + $0x88] sm:$0xf]
      %v691 = vld [vmem:[%s138 + $0x8c] sm:$0xf]
      %s692 = scalar_lea.vmem %s1, 16
      %v693 = vld [vmem:[%s692] sm:$0xf]
      %v694 = vld [vmem:[%s692 + $0x4] sm:$0x3]
      %v727 = vunpack.c.l.b16 %v660
      %v728 = vunpack.c.l.b16 %v661
      %v729 = vunpack.c.l.b16 %v662
      %v730 = vunpack.c.l.b16 %v663
      %v731 = vunpack.c.l.b16 %v664
      %v732 = vunpack.c.l.b16 %v665
      %v733 = vunpack.c.l.b16 %v666
      %v734 = vunpack.c.l.b16 %v667
      %v735 = vunpack.c.l.b16 %v668
      %v736 = vunpack.c.l.b16 %v669
      %v737 = vunpack.c.l.b16 %v670
      %v738 = vunpack.c.l.b16 %v671
      %v739 = vunpack.c.l.b16 %v672
      %v740 = vunpack.c.l.b16 %v673
      %v741 = vunpack.c.l.b16 %v674
      %v742 = vunpack.c.l.b16 %v675
      %v743 = vunpack.c.l.b16 %v676
      %v744 = vunpack.c.l.b16 %v677
      %v745 = vunpack.c.l.b16 %v678
      %v746 = vunpack.c.l.b16 %v679
      %v747 = vunpack.c.l.b16 %v680
      %v748 = vunpack.c.l.b16 %v681
      %v749 = vunpack.c.l.b16 %v682
      %v750 = vunpack.c.l.b16 %v683
      %v751 = vunpack.c.l.b16 %v684
      %v752 = vunpack.c.l.b16 %v685
      %v753 = vunpack.c.l.b16 %v686
      %v754 = vunpack.c.l.b16 %v687
      %v755 = vunpack.c.l.b16 %v688
      %v756 = vunpack.c.l.b16 %v689
      %v757 = vunpack.c.l.b16 %v690
      %v758 = vunpack.c.l.b16 %v691
      %v759 = vpack.c.b16 %v728, %v727
      %v760 = vpack.c.b16 %v730, %v729
      %v761 = vpack.c.b16 %v732, %v731
      %v762 = vpack.c.b16 %v734, %v733
      %v763 = vpack.c.b16 %v736, %v735
      %v764 = vpack.c.b16 %v738, %v737
      %v765 = vpack.c.b16 %v740, %v739
      %v766 = vpack.c.b16 %v742, %v741
      %v767 = vpack.c.b16 %v744, %v743
      %v768 = vpack.c.b16 %v746, %v745
      %v769 = vpack.c.b16 %v748, %v747
      %v770 = vpack.c.b16 %v750, %v749
      %v771 = vpack.c.b16 %v752, %v751
      %v772 = vpack.c.b16 %v754, %v753
      %v773 = vpack.c.b16 %v756, %v755
      %v774 = vpack.c.b16 %v758, %v757
      %v777 = vunpack.c.l.b16 %v693
      %v778 = vunpack.c.l.b16 %v694
      %v779 = vpack.c.b16 %v778, %v777
      %v781 = vsel %vm269, %v759, 0
      %v784 = vsel %vm269, %v760, 0
      %v787 = vsel %vm269, %v761, 0
      %v790 = vsel %vm269, %v762, 0
      %v793 = vsel %vm269, %v763, 0
      %v796 = vsel %vm269, %v764, 0
      %v799 = vsel %vm269, %v765, 0
      %v802 = vsel %vm269, %v766, 0
      %v805 = vsel %vm269, %v767, 0
      %v808 = vsel %vm269, %v768, 0
      %v811 = vsel %vm269, %v769, 0
      %v814 = vsel %vm269, %v770, 0
      %v817 = vsel %vm269, %v771, 0
      %v820 = vsel %vm269, %v772, 0
      %v823 = vsel %vm269, %v773, 0
      %v826 = vsel %vm269, %v774, 0
      %v829 = vsel %vm318, %v779, 0
      %831 = vmatprep.subr.bf16.mxu0 0
      %832 = vmatpush1.bf16.msra.mxu0 0
      %833 = vmatprep.subr.bf16.mxu0 0
      %834 = vmatpush1.bf16.msra.mxu0 0
      %835 = vmatprep.subr.bf16.mxu0 0
      %836 = vmatpush1.bf16.msra.mxu0 0
      %837 = vmatprep.subr.bf16.mxu0 0
      %838 = vmatpush1.bf16.msra.mxu0 0
      %839 = vmatprep.subr.bf16.mxu0 0
      %840 = vmatpush1.bf16.msra.mxu0 0
      %841 = vmatprep.subr.bf16.mxu0 0
      %842 = vmatpush1.bf16.msra.mxu0 0
      %843 = vmatprep.subr.bf16.mxu0 0
      %844 = vmatpush1.bf16.msra.mxu0 0
      %845 = vmatprep.subr.bf16.mxu0 0
      %846 = vmatpush1.bf16.msra.mxu0 %v829
      %847 = vmatprep.subr.bf16.mxu0 0
      %848 = vmatpush2.bf16.msra.mxu0 0
      %849 = vmatprep.subr.bf16.mxu0 0
      %850 = vmatpush2.bf16.msra.mxu0 0
      %851 = vmatprep.subr.bf16.mxu0 0
      %852 = vmatpush2.bf16.msra.mxu0 0
      %853 = vmatprep.subr.bf16.mxu0 0
      %854 = vmatpush2.bf16.msra.mxu0 0
      %855 = vmatprep.subr.bf16.mxu0 0
      %856 = vmatpush2.bf16.msra.mxu0 0
      %857 = vmatprep.subr.bf16.mxu0 0
      %858 = vmatpush2.bf16.msra.mxu0 0
      %859 = vmatprep.subr.bf16.mxu0 0
      %860 = vmatpush2.bf16.msra.mxu0 0
      %861 = vmatprep.subr.bf16.mxu0 0
      %862 = vmatpush2.bf16.msra.mxu0 0
      %863 = vmatprep.mubr.bf16.mxu0 0
      %864 = vmatmul.mubr.bf16.gmra.mxu0 %v781
      %v865 = vpop.f32.mrf.mxu0
      %v866 = vadd.f32 0.0, %v865
      %v867 = vpop.f32.mrf.mxu0
      %v868 = vpop.f32.mrf.mxu0
      %v869 = vadd.f32 0.0, %v868
      %v870 = vpop.f32.mrf.mxu0
      %871 = vmatprep.mubr.bf16.mxu0 0
      %872 = vmatmul.mubr.bf16.gmra.mxu0 %v784
      %v873 = vpop.f32.mrf.mxu0
      %v874 = vadd.f32 0.0, %v873
      %v875 = vpop.f32.mrf.mxu0
      %v876 = vpop.f32.mrf.mxu0
      %v877 = vadd.f32 0.0, %v876
      %v878 = vpop.f32.mrf.mxu0
      %879 = vmatprep.mubr.bf16.mxu0 0
      %880 = vmatmul.mubr.bf16.gmra.mxu0 %v787
      %v881 = vpop.f32.mrf.mxu0
      %v882 = vadd.f32 0.0, %v881
      %v883 = vpop.f32.mrf.mxu0
      %v884 = vpop.f32.mrf.mxu0
      %v885 = vadd.f32 0.0, %v884
      %v886 = vpop.f32.mrf.mxu0
      %887 = vmatprep.mubr.bf16.mxu0 0
      %888 = vmatmul.mubr.bf16.gmra.mxu0 %v790
      %v889 = vpop.f32.mrf.mxu0
      %v890 = vadd.f32 0.0, %v889
      %v891 = vpop.f32.mrf.mxu0
      %v892 = vpop.f32.mrf.mxu0
      %v893 = vadd.f32 0.0, %v892
      %v894 = vpop.f32.mrf.mxu0
      %895 = vmatprep.mubr.bf16.mxu0 0
      %896 = vmatmul.mubr.bf16.gmra.mxu0 %v793
      %v897 = vpop.f32.mrf.mxu0
      %v898 = vadd.f32 0.0, %v897
      %v899 = vpop.f32.mrf.mxu0
      %v900 = vpop.f32.mrf.mxu0
      %v901 = vadd.f32 0.0, %v900
      %v902 = vpop.f32.mrf.mxu0
      %903 = vmatprep.mubr.bf16.mxu0 0
      %904 = vmatmul.mubr.bf16.gmra.mxu0 %v796
      %v905 = vpop.f32.mrf.mxu0
      %v906 = vadd.f32 0.0, %v905
      %v907 = vpop.f32.mrf.mxu0
      %v908 = vpop.f32.mrf.mxu0
      %v909 = vadd.f32 0.0, %v908
      %v910 = vpop.f32.mrf.mxu0
      %911 = vmatprep.mubr.bf16.mxu0 0
      %912 = vmatmul.mubr.bf16.gmra.mxu0 %v799
      %v913 = vpop.f32.mrf.mxu0
      %v914 = vadd.f32 0.0, %v913
      %v915 = vpop.f32.mrf.mxu0
      %v916 = vpop.f32.mrf.mxu0
      %v917 = vadd.f32 0.0, %v916
      %v918 = vpop.f32.mrf.mxu0
      %919 = vmatprep.mubr.bf16.mxu0 0
      %920 = vmatmul.mubr.bf16.gmra.mxu0 %v802
      %v921 = vpop.f32.mrf.mxu0
      %v922 = vadd.f32 0.0, %v921
      %v923 = vpop.f32.mrf.mxu0
      %v924 = vpop.f32.mrf.mxu0
      %v925 = vadd.f32 0.0, %v924
      %v926 = vpop.f32.mrf.mxu0
      %927 = vmatprep.mubr.bf16.mxu0 0
      %928 = vmatmul.mubr.bf16.gmra.mxu0 %v805
      %v929 = vpop.f32.mrf.mxu0
      %v930 = vadd.f32 0.0, %v929
      %v931 = vpop.f32.mrf.mxu0
      %v932 = vpop.f32.mrf.mxu0
      %v933 = vadd.f32 0.0, %v932
      %v934 = vpop.f32.mrf.mxu0
      %935 = vmatprep.mubr.bf16.mxu0 0
      %936 = vmatmul.mubr.bf16.gmra.mxu0 %v808
      %v937 = vpop.f32.mrf.mxu0
      %v938 = vadd.f32 0.0, %v937
      %v939 = vpop.f32.mrf.mxu0
      %v940 = vpop.f32.mrf.mxu0
      %v941 = vadd.f32 0.0, %v940
      %v942 = vpop.f32.mrf.mxu0
      %943 = vmatprep.mubr.bf16.mxu0 0
      %944 = vmatmul.mubr.bf16.gmra.mxu0 %v811
      %v945 = vpop.f32.mrf.mxu0
      %v946 = vadd.f32 0.0, %v945
      %v947 = vpop.f32.mrf.mxu0
      %v948 = vpop.f32.mrf.mxu0
      %v949 = vadd.f32 0.0, %v948
      %v950 = vpop.f32.mrf.mxu0
      %951 = vmatprep.mubr.bf16.mxu0 0
      %952 = vmatmul.mubr.bf16.gmra.mxu0 %v814
      %v953 = vpop.f32.mrf.mxu0
      %v954 = vadd.f32 0.0, %v953
      %v955 = vpop.f32.mrf.mxu0
      %v956 = vpop.f32.mrf.mxu0
      %v957 = vadd.f32 0.0, %v956
      %v958 = vpop.f32.mrf.mxu0
      %959 = vmatprep.mubr.bf16.mxu0 0
      %960 = vmatmul.mubr.bf16.gmra.mxu0 %v817
      %v961 = vpop.f32.mrf.mxu0
      %v962 = vadd.f32 0.0, %v961
      %v963 = vpop.f32.mrf.mxu0
      %v964 = vpop.f32.mrf.mxu0
      %v965 = vadd.f32 0.0, %v964
      %v966 = vpop.f32.mrf.mxu0
      %967 = vmatprep.mubr.bf16.mxu0 0
      %968 = vmatmul.mubr.bf16.gmra.mxu0 %v820
      %v969 = vpop.f32.mrf.mxu0
      %v970 = vadd.f32 0.0, %v969
      %v971 = vpop.f32.mrf.mxu0
      %v972 = vpop.f32.mrf.mxu0
      %v973 = vadd.f32 0.0, %v972
      %v974 = vpop.f32.mrf.mxu0
      %975 = vmatprep.mubr.bf16.mxu0 0
      %976 = vmatmul.mubr.bf16.gmra.mxu0 %v823
      %v977 = vpop.f32.mrf.mxu0
      %v978 = vadd.f32 0.0, %v977
      %v979 = vpop.f32.mrf.mxu0
      %v980 = vpop.f32.mrf.mxu0
      %v981 = vadd.f32 0.0, %v980
      %v982 = vpop.f32.mrf.mxu0
      %983 = vmatprep.mubr.bf16.mxu0 0
      %984 = vmatmul.mubr.bf16.gmra.mxu0 %v826
      %v985 = vpop.f32.mrf.mxu0
      %v986 = vadd.f32 0.0, %v985
      %v987 = vpop.f32.mrf.mxu0
      %v988 = vpop.f32.mrf.mxu0
      %v989 = vadd.f32 0.0, %v988
      %v990 = vpop.f32.mrf.mxu0
      %991 = vdwg.mxu0
      %v992 = vadd.f32 %v534, %v866
      %v993 = vadd.f32 %v537, %v869
      %v994 = vadd.f32 %v542, %v874
      %v995 = vadd.f32 %v545, %v877
      %v996 = vadd.f32 %v550, %v882
      %v997 = vadd.f32 %v553, %v885
      %v998 = vadd.f32 %v558, %v890
      %v999 = vadd.f32 %v561, %v893
      %v1000 = vadd.f32 %v566, %v898
      %v1001 = vadd.f32 %v569, %v901
      %v1002 = vadd.f32 %v574, %v906
      %v1003 = vadd.f32 %v577, %v909
      %v1004 = vadd.f32 %v582, %v914
      %v1005 = vadd.f32 %v585, %v917
      %v1006 = vadd.f32 %v590, %v922
      %v1007 = vadd.f32 %v593, %v925
      %v1008 = vadd.f32 %v598, %v930
      %v1009 = vadd.f32 %v601, %v933
      %v1010 = vadd.f32 %v606, %v938
      %v1011 = vadd.f32 %v609, %v941
      %v1012 = vadd.f32 %v614, %v946
      %v1013 = vadd.f32 %v617, %v949
      %v1014 = vadd.f32 %v622, %v954
      %v1015 = vadd.f32 %v625, %v957
      %v1016 = vadd.f32 %v630, %v962
      %v1017 = vadd.f32 %v633, %v965
      %v1018 = vadd.f32 %v638, %v970
      %v1019 = vadd.f32 %v641, %v973
      %v1020 = vadd.f32 %v646, %v978
      %v1021 = vadd.f32 %v649, %v981
      %v1022 = vadd.f32 %v654, %v986
      %v1023 = vadd.f32 %v657, %v989
      %vm1024 = vcmask 64512
      %1025 = vst.msk [vmem:[%s143] sm:$0xff] %vm1024, %v992
      %1026 = vst.msk [vmem:[%s143 + $0x8] sm:$0xff] %vm1024, %v993
      %1027 = vst.msk [vmem:[%s143 + $0x10] sm:$0xff] %vm1024, %v994
      %1028 = vst.msk [vmem:[%s143 + $0x18] sm:$0xff] %vm1024, %v995
      %1029 = vst.msk [vmem:[%s143 + $0x20] sm:$0xff] %vm1024, %v996
      %1030 = vst.msk [vmem:[%s143 + $0x28] sm:$0xff] %vm1024, %v997
      %1031 = vst.msk [vmem:[%s143 + $0x30] sm:$0xff] %vm1024, %v998
      %1032 = vst.msk [vmem:[%s143 + $0x38] sm:$0xff] %vm1024, %v999
      %1033 = vst.msk [vmem:[%s143 + $0x40] sm:$0xff] %vm1024, %v1000
      %1034 = vst.msk [vmem:[%s143 + $0x48] sm:$0xff] %vm1024, %v1001
      %1035 = vst.msk [vmem:[%s143 + $0x50] sm:$0xff] %vm1024, %v1002
      %1036 = vst.msk [vmem:[%s143 + $0x58] sm:$0xff] %vm1024, %v1003
      %1037 = vst.msk [vmem:[%s143 + $0x60] sm:$0xff] %vm1024, %v1004
      %1038 = vst.msk [vmem:[%s143 + $0x68] sm:$0xff] %vm1024, %v1005
      %1039 = vst.msk [vmem:[%s143 + $0x70] sm:$0xff] %vm1024, %v1006
      %1040 = vst.msk [vmem:[%s143 + $0x78] sm:$0xff] %vm1024, %v1007
      %1041 = vst.msk [vmem:[%s143 + $0x80] sm:$0xff] %vm1024, %v1008
      %1042 = vst.msk [vmem:[%s143 + $0x88] sm:$0xff] %vm1024, %v1009
      %1043 = vst.msk [vmem:[%s143 + $0x90] sm:$0xff] %vm1024, %v1010
      %1044 = vst.msk [vmem:[%s143 + $0x98] sm:$0xff] %vm1024, %v1011
      %1045 = vst.msk [vmem:[%s143 + $0xa0] sm:$0xff] %vm1024, %v1012
      %1046 = vst.msk [vmem:[%s143 + $0xa8] sm:$0xff] %vm1024, %v1013
      %1047 = vst.msk [vmem:[%s143 + $0xb0] sm:$0xff] %vm1024, %v1014
      %1048 = vst.msk [vmem:[%s143 + $0xb8] sm:$0xff] %vm1024, %v1015
      %1049 = vst.msk [vmem:[%s143 + $0xc0] sm:$0xff] %vm1024, %v1016
      %1050 = vst.msk [vmem:[%s143 + $0xc8] sm:$0xff] %vm1024, %v1017
      %1051 = vst.msk [vmem:[%s143 + $0xd0] sm:$0xff] %vm1024, %v1018
      %1052 = vst.msk [vmem:[%s143 + $0xd8] sm:$0xff] %vm1024, %v1019
      %1053 = vst.msk [vmem:[%s143 + $0xe0] sm:$0xff] %vm1024, %v1020
      %1054 = vst.msk [vmem:[%s143 + $0xe8] sm:$0xff] %vm1024, %v1021
      %1055 = vst.msk [vmem:[%s143 + $0xf0] sm:$0xff] %vm1024, %v1022
      %1056 = vst.msk [vmem:[%s143 + $0xf8] sm:$0xff] %vm1024, %v1023
      %p1057 = scmp.lt.s32.totalorder %s13, 1
      %s1058 = scalar_select %p1057, %s13, 1
      %s1059 = smul.addr %s1058, 32
      %s1060 = smul.addr %s1059, 8
      %s1061 = scalar_lea.vmem %s2, %s1060
      // Predicated region
      $region29: #{tpu_custom_call.1} parent=27 // pred_check
        %p1062 = pneg %p78
      $region30: #{tpu_custom_call.1} parent=27 // pred_check_branch
        %1064 = sbr.rel (%p1062) target = $region32
      $region31: #{tpu_custom_call.1} parent=27 // pred_region
        _
      $region32: #{tpu_custom_call.1} parent=27 // pred_fallthru
        _
    $region28: #{tpu_custom_call.1} parent=5 // pred_fallthru
      _
    %p1065 = scmp.le.s32.totalorder 2, %s8
    // Predicated region
    $region33: #{tpu_custom_call.1} parent=5 // pred_check
      %p1066 = pneg %p1065
    $region34: #{tpu_custom_call.1} parent=5 // pred_check_branch
      %1068 = sbr.rel (%p1066) target = $region36
    $region35: #{tpu_custom_call.1} parent=5 // pred_region
      %s1069 = ssub.s32 %s8, 2
      // Predicated region
      $region37: #{tpu_custom_call.1} parent=35 // pred_check
        %p1070 = pneg %p84
      $region38: #{tpu_custom_call.1} parent=35 // pred_check_branch
        %1072 = sbr.rel (%p1070) target = $region40
      $region39: #{tpu_custom_call.1} parent=35 // pred_region
        %p1073 = scmp.lt.s32.totalorder %s14, 1
        %s1074 = scalar_select %p1073, %s14, 1
        %s1075 = smul.addr %s1074, 32
        %s1076 = smul.addr %s1075, 8
        %s1077 = scalar_lea.vmem %s2, %s1076
      $region40: #{tpu_custom_call.1} parent=35 // pred_fallthru
        _
    $region36: #{tpu_custom_call.1} parent=5 // pred_fallthru
      _
  $region6: #{tpu_custom_call.1} parent=0 // loop_footer
    %s12 = sadd.s32 1, %s8
  $region7: #{tpu_custom_call.1} parent=0 // loop_footer_branch
    %7 = sbr.rel target = $region3
  $region8: #{tpu_custom_call.1} parent=0 // loop_exit
    _

</llo_original>
